<compile_context>
chip_gen: v7x
topology: tpu7x:2x2x1
jax: 0.10.0
libtpu: 0.0.40
codegen_flags: <defaults>
</compile_context>

<pallas_src>
import jax
import jax.numpy as jnp
from jax.experimental import pallas as pl
from jax.experimental.pallas import tpu as pltpu

INPUT_SIZE = 30
HIDDEN_SIZE = 64
OUTPUT_SIZE = 1


def _round_up(n, m):
    return ((n + m - 1) // m) * m


def _mlp_kernel(x_ref, w1_ref, b1_ref, w2_ref, b2_ref, o_ref):
    # fc1: [TB, in] @ [in, hidden] on the MXU, f32 accumulation.
    h = jnp.dot(x_ref[...], w1_ref[...], preferred_element_type=jnp.float32)
    h = jnp.maximum(h + b1_ref[...], 0.0)  # bias + ReLU on the VPU
    # fc2 has a single output column: skip the MXU (N=1 would use 1 of 128/256
    # output columns) and do a VPU multiply + cross-lane reduction instead.
    z = jnp.sum(h * w2_ref[...], axis=-1, keepdims=True) + b2_ref[0, 0]
    # Sigmoid: transcendental goes to the EUP slot.
    o_ref[...] = jax.nn.sigmoid(z)


def cancer_classifier_forward(x, w1, b1, w2, b2, *, block_rows=1024,
                              compute_dtype=None):
    """x: [B, INPUT_SIZE] -> sigmoid(relu(x @ w1 + b1) @ w2 + b2): [B, 1] f32."""
    B = x.shape[0]
    if compute_dtype is None:
        compute_dtype = x.dtype

    # Streamed operand (dominates HBM traffic) + fc1 weight in compute_dtype.
    x_c = x.astype(compute_dtype)
    w1_c = w1.astype(compute_dtype)
    # Small operands stay f32; w2 becomes a [1, hidden] row for the VPU path,
    # b2 becomes a [1, 1] SMEM scalar.
    b1_r = jnp.asarray(b1, jnp.float32).reshape(1, HIDDEN_SIZE)
    w2_r = jnp.asarray(w2, jnp.float32).reshape(1, HIDDEN_SIZE)
    b2_s = jnp.asarray(b2, jnp.float32).reshape(1, 1)

    # Batch tile: multiple of 16 sublanes (covers both f32 and bf16 packing).
    tb = min(int(block_rows), _round_up(B, 16))
    tb = _round_up(tb, 16)
    b_padded = _round_up(B, tb)
    if b_padded != B:
        x_c = jnp.pad(x_c, ((0, b_padded - B), (0, 0)))

    grid = (b_padded // tb,)

    out = pl.pallas_call(
        _mlp_kernel,
        out_shape=jax.ShapeDtypeStruct((b_padded, OUTPUT_SIZE), jnp.float32),
        grid=grid,
        in_specs=[
            # streamed: new batch tile each grid step (double-buffered DMA)
            pl.BlockSpec((tb, INPUT_SIZE), lambda i: (i, 0)),
            # weights/biases: same block every step -> resident in VMEM
            pl.BlockSpec((INPUT_SIZE, HIDDEN_SIZE), lambda i: (0, 0)),
            pl.BlockSpec((1, HIDDEN_SIZE), lambda i: (0, 0)),
            pl.BlockSpec((1, HIDDEN_SIZE), lambda i: (0, 0)),
            # scalar second bias in SMEM (avoids a padded (8,128) VMEM tile)
            pl.BlockSpec(memory_space=pltpu.MemorySpace.SMEM),
        ],
        out_specs=pl.BlockSpec((tb, OUTPUT_SIZE), lambda i: (i, 0)),
        compiler_params=pltpu.CompilerParams(
            dimension_semantics=("parallel",),
        ),
    )(x_c, w1_c, b1_r, w2_r, b2_s)

    return out[:B]


def init_params(key):
    """Deterministic init mimicking nn.Linear's uniform(-1/sqrt(fan_in), 1/sqrt(fan_in))."""
    k1, k2, k3, k4 = jax.random.split(key, 4)
    bound1 = 1.0 / jnp.sqrt(INPUT_SIZE)
    bound2 = 1.0 / jnp.sqrt(HIDDEN_SIZE)
    w1 = jax.random.uniform(k1, (INPUT_SIZE, HIDDEN_SIZE), jnp.float32, -bound1, bound1)
    b1 = jax.random.uniform(k2, (1, HIDDEN_SIZE), jnp.float32, -bound1, bound1)
    w2 = jax.random.uniform(k3, (HIDDEN_SIZE, OUTPUT_SIZE), jnp.float32, -bound2, bound2)
    b2 = jax.random.uniform(k4, (1, OUTPUT_SIZE), jnp.float32, -bound2, bound2)
    return w1, b1, w2, b2


if __name__ == "__main__":
    key = jax.random.PRNGKey(0)
    kx, kp = jax.random.split(key)

    w1, b1, w2, b2 = init_params(kp)

    batch = 104  # not a multiple of the tile -> exercises padding + slicing
    x = jax.random.normal(kx, (batch, INPUT_SIZE), dtype=jnp.float32)

    # Plain-JAX reference.
    ref = jax.nn.sigmoid(jnp.maximum(x @ w1 + b1, 0.0) @ w2 + b2)

    # f32 path with a small tile so the batch grid runs several pipelined steps.
    out = cancer_classifier_forward(x, w1, b1, w2, b2, block_rows=32)
    out = jax.block_until_ready(out)
    assert out.shape == (batch, OUTPUT_SIZE)
    assert jnp.allclose(out, ref, atol=1e-5), "f32 kernel mismatch vs reference"

    # bf16-streaming path (halves HBM bytes; f32 accumulation on the MXU).
    out_bf16 = cancer_classifier_forward(
        x, w1, b1, w2, b2, block_rows=64, compute_dtype=jnp.bfloat16)
    out_bf16 = jax.block_until_ready(out_bf16)
    assert jnp.allclose(out_bf16, ref, atol=5e-2), "bf16 kernel mismatch vs reference"

    print("KERNEL_OK")
</pallas_src>

<mosaic_0001>
module attributes {stable_mosaic.version = 11 : i64} {
  func.func @_mlp_kernel(%arg0: i32, %arg1: memref<32x30xf32, #tpu.memory_space<vmem>>, %arg2: memref<30x64xf32, #tpu.memory_space<vmem>>, %arg3: memref<1x64xf32, #tpu.memory_space<vmem>>, %arg4: memref<1x64xf32, #tpu.memory_space<vmem>>, %arg5: memref<1x1xf32, #tpu.memory_space<smem>>, %arg6: memref<32x1xf32, #tpu.memory_space<vmem>>) attributes {dimension_semantics = [#tpu.dimension_semantics<parallel>], iteration_bounds = array<i64: 4>, scalar_prefetch = 0 : i64, scratch_operands = 0 : i64, tpu.core_type = #tpu.core_type<tc>, window_params = [{transform_indices = @transform_0, window_bounds = array<i64: 32, 30>}, {pipeline_mode = #tpu.pipeline_mode<synchronous>, transform_indices = @transform_1, window_bounds = array<i64: 30, 64>}, {pipeline_mode = #tpu.pipeline_mode<synchronous>, transform_indices = @transform_2, window_bounds = array<i64: 1, 64>}, {pipeline_mode = #tpu.pipeline_mode<synchronous>, transform_indices = @transform_3, window_bounds = array<i64: 1, 64>}, {transform_indices = @transform_4, window_bounds = array<i64: 1, 1>}, {transform_indices = @transform_5, window_bounds = array<i64: 32, 1>}]} {
    %c0 = arith.constant 0 : index
    %c0_0 = arith.constant 0 : index
    %0 = vector.load %arg1[%c0, %c0_0] : memref<32x30xf32, #tpu.memory_space<vmem>>, vector<32x30xf32>
    %c0_1 = arith.constant 0 : index
    %c0_2 = arith.constant 0 : index
    %1 = vector.load %arg2[%c0_1, %c0_2] : memref<30x64xf32, #tpu.memory_space<vmem>>, vector<30x64xf32>
    %cst = arith.constant dense<0.000000e+00> : vector<32x64xf32>
    %2 = tpu.matmul %0, %1, %cst {dimension_numbers = #tpu.dot_dimension_numbers<[1], [0], [0], [1], [0, 0, 1, 1], [], []>} : vector<32x30xf32>, vector<30x64xf32>, vector<32x64xf32> -> vector<32x64xf32>
    %c0_3 = arith.constant 0 : index
    %c0_4 = arith.constant 0 : index
    %3 = vector.load %arg3[%c0_3, %c0_4] : memref<1x64xf32, #tpu.memory_space<vmem>>, vector<1x64xf32>
    %4 = vector.broadcast %3 : vector<1x64xf32> to vector<32x64xf32>
    %5 = arith.addf %2, %4 : vector<32x64xf32>
    %cst_5 = arith.constant 0.000000e+00 : f32
    %6 = vector.broadcast %cst_5 : f32 to vector<32x64xf32>
    %7 = arith.maximumf %5, %6 : vector<32x64xf32>
    %c0_6 = arith.constant 0 : index
    %c0_7 = arith.constant 0 : index
    %8 = vector.load %arg4[%c0_6, %c0_7] : memref<1x64xf32, #tpu.memory_space<vmem>>, vector<1x64xf32>
    %9 = vector.broadcast %8 : vector<1x64xf32> to vector<32x64xf32>
    %10 = arith.mulf %7, %9 : vector<32x64xf32>
    %cst_8 = arith.constant dense<0.000000e+00> : vector<32xf32>
    %11 = vector.multi_reduction <add>, %10, %cst_8 [1] : vector<32x64xf32> to vector<32xf32>
    %12 = vector.shape_cast %11 : vector<32xf32> to vector<32x1xf32>
    %c0_9 = arith.constant 0 : index
    %c0_10 = arith.constant 0 : index
    %13 = memref.load %arg5[%c0_9, %c0_10] : memref<1x1xf32, #tpu.memory_space<smem>>
    %14 = vector.broadcast %13 : f32 to vector<32x1xf32>
    %15 = arith.addf %12, %14 : vector<32x1xf32>
    %16 = arith.negf %15 : vector<32x1xf32>
    %17 = math.exp %16 : vector<32x1xf32>
    %cst_11 = arith.constant 1.000000e+00 : f32
    %18 = vector.broadcast %cst_11 : f32 to vector<32x1xf32>
    %19 = arith.addf %18, %17 : vector<32x1xf32>
    %20 = arith.divf %18, %19 : vector<32x1xf32>
    %c0_12 = arith.constant 0 : index
    %c0_13 = arith.constant 0 : index
    %21 = vector.load %arg6[%c0_12, %c0_13] : memref<32x1xf32, #tpu.memory_space<vmem>>, vector<32x1xf32>
    tpu.vector_store %arg6[%c0_12, %c0_13], %20 {strides = array<i32>} : memref<32x1xf32, #tpu.memory_space<vmem>>, vector<32x1xf32>,
    return
  }
  func.func @transform_0(%arg0: i32) -> (i32, i32) {
    %c0_i32 = arith.constant 0 : i32
    %c0_i32_0 = arith.constant 0 : i32
    return %arg0, %c0_i32 : i32, i32
  }
  func.func @transform_1(%arg0: i32) -> (i32, i32) {
    %c0_i32 = arith.constant 0 : i32
    %c0_i32_0 = arith.constant 0 : i32
    %c0_i32_1 = arith.constant 0 : i32
    return %c0_i32, %c0_i32_0 : i32, i32
  }
  func.func @transform_2(%arg0: i32) -> (i32, i32) {
    %c0_i32 = arith.constant 0 : i32
    %c0_i32_0 = arith.constant 0 : i32
    %c0_i32_1 = arith.constant 0 : i32
    return %c0_i32, %c0_i32_0 : i32, i32
  }
  func.func @transform_3(%arg0: i32) -> (i32, i32) {
    %c0_i32 = arith.constant 0 : i32
    %c0_i32_0 = arith.constant 0 : i32
    %c0_i32_1 = arith.constant 0 : i32
    return %c0_i32, %c0_i32_0 : i32, i32
  }
  func.func @transform_4(%arg0: i32) -> (i32, i32) {
    %c0_i32 = arith.constant 0 : i32
    %c0_i32_0 = arith.constant 0 : i32
    %c0_i32_1 = arith.constant 0 : i32
    return %c0_i32, %c0_i32_0 : i32, i32
  }
  func.func @transform_5(%arg0: i32) -> (i32, i32) {
    %c0_i32 = arith.constant 0 : i32
    %c0_i32_0 = arith.constant 0 : i32
    return %arg0, %c0_i32 : i32, i32
  }
}

</mosaic_0001>

<llo_original>
// kernel: tpu_custom_call.1
$region0: #{tpu_custom_call.1}
  #allocation0 [shape = 'u32[]', space=smem, size = 0x4, offset = 0x4, fixed_abs, tag = 'smem constant byte address 0x4 - core index']
  #allocation1 [shape = 'u32[144,128]{1,0:T(1,128)}', space=vmem, size = 0x12000, scoped, tag = 'internal scratch']
  #allocation2 [shape = 'f32[1,1]{1,0:T(1,128)S(6)}', space=smem, size = 0x200, scoped, tag = 'scoped memory for tpu_custom_call.1']
  %s0 = inlined_call_operand.vmem [shape: f32[128,30], index: 0, kind: input, shape index: {}]
  %s1 = inlined_call_operand.vmem [shape: f32[30,64], index: 1, kind: input, shape index: {}]
  %s2 = inlined_call_operand.vmem [shape: f32[1,64], index: 2, kind: input, shape index: {}]
  %s3 = inlined_call_operand.vmem [shape: f32[1,64], index: 3, kind: input, shape index: {}]
  %s4 = inlined_call_operand.<no memory space> [shape: f32[1,1], index: 4, kind: input, shape index: {}]
  %s5 = inlined_call_operand.vmem [shape: f32[128,1], index: 5, kind: output, shape index: {}]
  %s6 = sld [smem:[#allocation0]]
  $region53: #{tpu_custom_call.1} parent=0
    _
  %s8 = ssub.s32 1, %s6
  %s9 = scalar_select 0, %s8, %s6
  %10 = sst [smem:[#allocation2]] %s4
  loop: start=0, step=1, limit=6
  $region2: #{tpu_custom_call.1} parent=0 // loop_pre_header
    _
  $region3: #{tpu_custom_call.1} parent=0 // loop_header
    %s12 = sphi 0, %s16
    %p13 = scmp.ge.s32.totalorder %s12, 6
    %s22 = sphi 0, %s24
    %s25 = sphi 0, %s22
    %s26 = sphi 0, %s25
    %s42 = sphi 0, %s26
    %s46 = sphi 0, %s46
    %s48 = sphi 0, %s46
    %s49 = sphi 0, %s48
    %s63 = sphi 0, %s49
    %s67 = sphi 0, %s67
    %s69 = sphi 0, %s67
    %s70 = sphi 0, %s69
    %s84 = sphi 0, %s70
    %s88 = sphi 0, %s88
    %s90 = sphi 0, %s88
    %s91 = sphi 0, %s90
    %s105 = sphi 0, %s91
    %s109 = sphi 0, %s109
    %s111 = sphi 0, %s109
    %s112 = sphi 0, %s111
    %s126 = sphi 0, %s112
    %s132 = sphi 0, %s134
    %s135 = sphi 0, %s132
    %s136 = sphi 0, %s135
    %s152 = sphi 0, %s136
  $region4: #{tpu_custom_call.1} parent=0 // loop_header_branch
    %15 = sbr.rel (%p13) target = $region8
  $region5: #{tpu_custom_call.1} parent=0 // loop_body
    %s17 = ssub.s32 %s12, 1
    %s18 = ssub.s32 %s12, 2
    %s19 = sadd.s32 %s12, 1
    %s20 = ssub.s32 %s12, %s19
    %p21 = scmp.eq.s32.totalorder %s20, 0
    %s23 = sadd.s32 %s22, 1
    %s24 = scalar_select %p21, %s22, %s23
    %p27 = pneg %p21
    %p28 = scmp.eq.s32.totalorder %s12, 3
    %p29 = por %p27, %p28
    %p30 = scmp.ne.s32.totalorder %s22, %s25
    %p31 = scmp.eq.s32.totalorder %s12, 0
    %p32 = por %p30, %p31
    %p33 = scmp.ne.s32.totalorder %s22, %s25
    %p34 = scmp.eq.s32.totalorder %s17, 3
    %p35 = por %p33, %p34
    %p36 = scmp.ne.s32.totalorder %s25, %s26
    %p37 = scmp.eq.s32.totalorder %s17, 0
    %p38 = por %p36, %p37
    %p39 = scmp.ne.s32.totalorder %s25, %s26
    %p40 = scmp.eq.s32.totalorder %s18, 3
    %p41 = por %p39, %p40
    %p43 = scmp.ne.s32.totalorder %s26, %s42
    %p44 = scmp.eq.s32.totalorder %s18, 0
    %p45 = por %p43, %p44
    %s47 = sadd.s32 %s46, 1
    %p50 = scmp.eq.s32.totalorder %s12, 3
    %p51 = scmp.ne.s32.totalorder %s46, %s48
    %p52 = scmp.eq.s32.totalorder %s12, 0
    %p53 = por %p51, %p52
    %p54 = scmp.ne.s32.totalorder %s46, %s48
    %p55 = scmp.eq.s32.totalorder %s17, 3
    %p56 = por %p54, %p55
    %p57 = scmp.ne.s32.totalorder %s48, %s49
    %p58 = scmp.eq.s32.totalorder %s17, 0
    %p59 = por %p57, %p58
    %p60 = scmp.ne.s32.totalorder %s48, %s49
    %p61 = scmp.eq.s32.totalorder %s18, 3
    %p62 = por %p60, %p61
    %p64 = scmp.ne.s32.totalorder %s49, %s63
    %p65 = scmp.eq.s32.totalorder %s18, 0
    %p66 = por %p64, %p65
    %s68 = sadd.s32 %s67, 1
    %p71 = scmp.eq.s32.totalorder %s12, 3
    %p72 = scmp.ne.s32.totalorder %s67, %s69
    %p73 = scmp.eq.s32.totalorder %s12, 0
    %p74 = por %p72, %p73
    %p75 = scmp.ne.s32.totalorder %s67, %s69
    %p76 = scmp.eq.s32.totalorder %s17, 3
    %p77 = por %p75, %p76
    %p78 = scmp.ne.s32.totalorder %s69, %s70
    %p79 = scmp.eq.s32.totalorder %s17, 0
    %p80 = por %p78, %p79
    %p81 = scmp.ne.s32.totalorder %s69, %s70
    %p82 = scmp.eq.s32.totalorder %s18, 3
    %p83 = por %p81, %p82
    %p85 = scmp.ne.s32.totalorder %s70, %s84
    %p86 = scmp.eq.s32.totalorder %s18, 0
    %p87 = por %p85, %p86
    %s89 = sadd.s32 %s88, 1
    %p92 = scmp.eq.s32.totalorder %s12, 3
    %p93 = scmp.ne.s32.totalorder %s88, %s90
    %p94 = scmp.eq.s32.totalorder %s12, 0
    %p95 = por %p93, %p94
    %p96 = scmp.ne.s32.totalorder %s88, %s90
    %p97 = scmp.eq.s32.totalorder %s17, 3
    %p98 = por %p96, %p97
    %p99 = scmp.ne.s32.totalorder %s90, %s91
    %p100 = scmp.eq.s32.totalorder %s17, 0
    %p101 = por %p99, %p100
    %p102 = scmp.ne.s32.totalorder %s90, %s91
    %p103 = scmp.eq.s32.totalorder %s18, 3
    %p104 = por %p102, %p103
    %p106 = scmp.ne.s32.totalorder %s91, %s105
    %p107 = scmp.eq.s32.totalorder %s18, 0
    %p108 = por %p106, %p107
    %s110 = sadd.s32 %s109, 1
    %p113 = scmp.eq.s32.totalorder %s12, 3
    %p114 = scmp.ne.s32.totalorder %s109, %s111
    %p115 = scmp.eq.s32.totalorder %s12, 0
    %p116 = por %p114, %p115
    %p117 = scmp.ne.s32.totalorder %s109, %s111
    %p118 = scmp.eq.s32.totalorder %s17, 3
    %p119 = por %p117, %p118
    %p120 = scmp.ne.s32.totalorder %s111, %s112
    %p121 = scmp.eq.s32.totalorder %s17, 0
    %p122 = por %p120, %p121
    %p123 = scmp.ne.s32.totalorder %s111, %s112
    %p124 = scmp.eq.s32.totalorder %s18, 3
    %p125 = por %p123, %p124
    %p127 = scmp.ne.s32.totalorder %s112, %s126
    %p128 = scmp.eq.s32.totalorder %s18, 0
    %p129 = por %p127, %p128
    %s130 = ssub.s32 %s12, %s19
    %p131 = scmp.eq.s32.totalorder %s130, 0
    %s133 = sadd.s32 %s132, 1
    %s134 = scalar_select %p131, %s132, %s133
    %p137 = pneg %p131
    %p138 = scmp.eq.s32.totalorder %s12, 3
    %p139 = por %p137, %p138
    %p140 = scmp.ne.s32.totalorder %s132, %s135
    %p141 = scmp.eq.s32.totalorder %s12, 0
    %p142 = por %p140, %p141
    %p143 = scmp.ne.s32.totalorder %s132, %s135
    %p144 = scmp.eq.s32.totalorder %s17, 3
    %p145 = por %p143, %p144
    %p146 = scmp.ne.s32.totalorder %s135, %s136
    %p147 = scmp.eq.s32.totalorder %s17, 0
    %p148 = por %p146, %p147
    %p149 = scmp.ne.s32.totalorder %s135, %s136
    %p150 = scmp.eq.s32.totalorder %s18, 3
    %p151 = por %p149, %p150
    %p153 = scmp.ne.s32.totalorder %s136, %s152
    %p154 = scmp.eq.s32.totalorder %s18, 0
    %p155 = por %p153, %p154
    %p156 = scmp.le.s32.totalorder 1, %s12
    %p157 = scmp.lt.s32.totalorder %s12, 5
    %p158 = pnand %p156, %p157
    %p159 = pneg %p158
    // Predicated region
    $region9: #{tpu_custom_call.1} parent=5 // pred_check
      _
    $region10: #{tpu_custom_call.1} parent=5 // pred_check_branch
      %161 = sbr.rel (%p158) target = $region12
    $region11: #{tpu_custom_call.1} parent=5 // pred_region
      %s162 = ssub.s32 %s12, 1
      // Predicated region
      $region13: #{tpu_custom_call.1} parent=11 // pred_check
        %p163 = pneg %p59
      $region14: #{tpu_custom_call.1} parent=11 // pred_check_branch
        %165 = sbr.rel (%p163) target = $region16
      $region15: #{tpu_custom_call.1} parent=11 // pred_region
        _
      $region16: #{tpu_custom_call.1} parent=11 // pred_fallthru
        _
      // Predicated region
      $region17: #{tpu_custom_call.1} parent=11 // pred_check
        %p166 = pneg %p80
      $region18: #{tpu_custom_call.1} parent=11 // pred_check_branch
        %168 = sbr.rel (%p166) target = $region20
      $region19: #{tpu_custom_call.1} parent=11 // pred_region
        _
      $region20: #{tpu_custom_call.1} parent=11 // pred_fallthru
        _
      // Predicated region
      $region21: #{tpu_custom_call.1} parent=11 // pred_check
        %p169 = pneg %p101
      $region22: #{tpu_custom_call.1} parent=11 // pred_check_branch
        %171 = sbr.rel (%p169) target = $region24
      $region23: #{tpu_custom_call.1} parent=11 // pred_region
        _
      $region24: #{tpu_custom_call.1} parent=11 // pred_fallthru
        _
      // Predicated region
      $region25: #{tpu_custom_call.1} parent=11 // pred_check
        %p172 = pneg %p122
      $region26: #{tpu_custom_call.1} parent=11 // pred_check_branch
        %174 = sbr.rel (%p172) target = $region28
      $region27: #{tpu_custom_call.1} parent=11 // pred_region
        _
      $region28: #{tpu_custom_call.1} parent=11 // pred_fallthru
        _
    $region12: #{tpu_custom_call.1} parent=5 // pred_fallthru
      _
    %p175 = scmp.lt.s32.totalorder %s12, 4
    // Predicated region
    $region29: #{tpu_custom_call.1} parent=5 // pred_check
      %p176 = pneg %p175
    $region30: #{tpu_custom_call.1} parent=5 // pred_check_branch
      %178 = sbr.rel (%p176) target = $region32
    $region31: #{tpu_custom_call.1} parent=5 // pred_region
      // Predicated region
      $region33: #{tpu_custom_call.1} parent=31 // pred_check
        %p179 = pneg %p32
      $region34: #{tpu_custom_call.1} parent=31 // pred_check_branch
        %181 = sbr.rel (%p179) target = $region36
      $region35: #{tpu_custom_call.1} parent=31 // pred_region
        %s182 = smul.u32 4, %s12
        %p183 = scmp.lt.s32.totalorder %s182, 15
        %s184 = scalar_select %p183, %s182, 15
        %s185 = smul.addr %s184, 8
        %s186 = scalar_lea.vmem %s0, %s185
        %s187 = smul.u32 4, %s12
      $region36: #{tpu_custom_call.1} parent=31 // pred_fallthru
        _
    $region32: #{tpu_custom_call.1} parent=5 // pred_fallthru
      _
    %p188 = scmp.le.s32.totalorder 1, %s12
    %p189 = scmp.lt.s32.totalorder %s12, 5
    %p190 = pnand %p188, %p189
    %p191 = pneg %p190
    // Predicated region
    $region37: #{tpu_custom_call.1} parent=5 // pred_check
      _
    $region38: #{tpu_custom_call.1} parent=5 // pred_check_branch
      %193 = sbr.rel (%p190) target = $region40
    $region39: #{tpu_custom_call.1} parent=5 // pred_region
      %s194 = ssub.s32 %s12, 1
      %s195 = smul.u32 4, %s17
      %p196 = scmp.lt.s32.totalorder %s195, 15
      %s197 = scalar_select %p196, %s195, 15
      %s198 = smul.addr %s197, 8
      %s199 = scalar_lea.vmem %s0, %s198
      %p200 = pneg %p38
      %p201 = pneg %p35
      %p202 = pneg %p59
      %p203 = pneg %p56
      %p204 = pneg %p80
      %p205 = pneg %p77
      %p206 = pneg %p101
      %p207 = pneg %p98
      %p208 = pneg %p122
      %p209 = pneg %p119
      %p210 = pneg %p148
      %p211 = pneg %p145
      %s212 = smul.u32 4, %s17
      %p213 = scmp.lt.s32.totalorder %s212, 15
      %s214 = scalar_select %p213, %s212, 15
      %s215 = smul.addr %s214, 8
      %s216 = scalar_lea.vmem %s5, %s215
      %s217 = smul.u32 4, %s17
      %p218 = scmp.lt.s32.totalorder %s217, 15
      %s219 = scalar_select %p218, %s217, 15
      %s220 = smul.addr %s219, 8
      %s221 = scalar_lea.vmem %s0, %s220
      %s222 = smul.u32 4, %s17
      %s223 = smul.u32 4, %s17
      %p224 = scmp.lt.s32.totalorder %s223, 15
      %s225 = scalar_select %p224, %s223, 15
      %s226 = smul.addr %s225, 8
      %s227 = scalar_lea.vmem %s5, %s226
      %s228 = smul.u32 4, %s17
      %v229 = vld [vmem:[%s221] sm:$0xff]
      %v230 = vld [vmem:[%s221 + $0x8] sm:$0xff]
      %v231 = vld [vmem:[%s221 + $0x10] sm:$0xff]
      %v232 = vld [vmem:[%s221 + $0x18] sm:$0xff]
      %v233 = vld [vmem:[%s1] sm:$0xff]
      %v234 = vld [vmem:[%s1 + $0x8] sm:$0xff]
      %v235 = vld [vmem:[%s1 + $0x10] sm:$0xff]
      %v236 = vld [vmem:[%s1 + $0x18] sm:$0x3f]
      %v237 = vld [vmem:[%s2] sm:$0x1]
      %v239 = vlaneseq
      %v240 = vshrl.u32 %v239, 7
      %v241 = vsub.s32 0, %v240
      %v242 = vrot.slane %v237, %v241
      %vm244 = vcmask 244736
      %v246 = vsel %vm244, %v229, 0
      %v249 = vsel %vm244, %v230, 0
      %v252 = vsel %vm244, %v231, 0
      %v255 = vsel %vm244, %v232, 0
      %vm257 = vcmask 1045504
      %v259 = vsel %vm257, %v236, 0
      %261 = vmatprep.subr.mxu0 0.0
      %262 = vmatpush1.msra.mxu0 %v233
      %263 = vmatprep.subr.mxu0 0.0
      %264 = vmatpush1.msra.mxu0 %v234
      %265 = vmatprep.subr.mxu0 0.0
      %266 = vmatpush1.msra.mxu0 %v235
      %267 = vmatprep.subr.mxu0 0.0
      %268 = vmatpush1.msra.mxu0 %v259
      %269 = vmatprep.subr.mxu0 0.0
      %270 = vmatpush1.msra.mxu0 0.0
      %271 = vmatprep.subr.mxu0 0.0
      %272 = vmatpush1.msra.mxu0 0.0
      %273 = vmatprep.subr.mxu0 0.0
      %274 = vmatpush1.msra.mxu0 0.0
      %275 = vmatprep.subr.mxu0 0.0
      %276 = vmatpush1.msra.mxu0 0.0
      %277 = vmatprep.subr.mxu0 0.0
      %278 = vmatpush1.msra.mxu0 0.0
      %279 = vmatprep.subr.mxu0 0.0
      %280 = vmatpush1.msra.mxu0 0.0
      %281 = vmatprep.subr.mxu0 0.0
      %282 = vmatpush1.msra.mxu0 0.0
      %283 = vmatprep.subr.mxu0 0.0
      %284 = vmatpush1.msra.mxu0 0.0
      %285 = vmatprep.subr.mxu0 0.0
      %286 = vmatpush1.msra.mxu0 0.0
      %287 = vmatprep.subr.mxu0 0.0
      %288 = vmatpush1.msra.mxu0 0.0
      %289 = vmatprep.subr.mxu0 0.0
      %290 = vmatpush1.msra.mxu0 0.0
      %291 = vmatprep.subr.mxu0 0.0
      %292 = vmatpush1.msra.mxu0 0.0
      %293 = vmatprep.subr.mxu0 0.0
      %294 = vmatpush1.msra.mxu0 0.0
      %295 = vmatprep.subr.mxu0 0.0
      %296 = vmatpush1.msra.mxu0 0.0
      %297 = vmatprep.subr.mxu0 0.0
      %298 = vmatpush1.msra.mxu0 0.0
      %299 = vmatprep.subr.mxu0 0.0
      %300 = vmatpush1.msra.mxu0 0.0
      %301 = vmatprep.subr.mxu0 0.0
      %302 = vmatpush1.msra.mxu0 0.0
      %303 = vmatprep.subr.mxu0 0.0
      %304 = vmatpush1.msra.mxu0 0.0
      %305 = vmatprep.subr.mxu0 0.0
      %306 = vmatpush1.msra.mxu0 0.0
      %307 = vmatprep.subr.mxu0 0.0
      %308 = vmatpush1.msra.mxu0 0.0
      %309 = vmatprep.subr.mxu0 0.0
      %310 = vmatpush1.msra.mxu0 0.0
      %311 = vmatprep.subr.mxu0 0.0
      %312 = vmatpush1.msra.mxu0 0.0
      %313 = vmatprep.subr.mxu0 0.0
      %314 = vmatpush1.msra.mxu0 0.0
      %315 = vmatprep.subr.mxu0 0.0
      %316 = vmatpush1.msra.mxu0 0.0
      %317 = vmatprep.subr.mxu0 0.0
      %318 = vmatpush1.msra.mxu0 0.0
      %319 = vmatprep.subr.mxu0 0.0
      %320 = vmatpush1.msra.mxu0 0.0
      %321 = vmatprep.subr.mxu0 0.0
      %322 = vmatpush1.msra.mxu0 0.0
      %323 = vmatprep.subr.mxu0 0.0
      %324 = vmatpush1.msra.mxu0 0.0
      %325 = vmatprep.mubr.f32.mxu0 0.0
      %326 = vmatmul.mubr.f32.gmra.mrb[0].mxu0 %v246
      %v327 = vpop.f32.mrb[0].mxu0
      %v328 = vadd.f32 %v242, %v327
      %v329 = vpop.f32.mrb[0].mxu0
      %330 = vmatprep.mubr.f32.mxu0 0.0
      %331 = vmatmul.mubr.f32.gmra.mrb[0].mxu0 %v249
      %v332 = vpop.f32.mrb[0].mxu0
      %v333 = vadd.f32 %v242, %v332
      %v334 = vpop.f32.mrb[0].mxu0
      %335 = vmatprep.mubr.f32.mxu0 0.0
      %336 = vmatmul.mubr.f32.gmra.mrb[0].mxu0 %v252
      %v337 = vpop.f32.mrb[0].mxu0
      %v338 = vadd.f32 %v242, %v337
      %v339 = vpop.f32.mrb[0].mxu0
      %340 = vmatprep.mubr.f32.mxu0 0.0
      %341 = vmatmul.mubr.f32.gmra.mrb[0].mxu0 %v255
      %v342 = vpop.f32.mrb[0].mxu0
      %v343 = vadd.f32 %v242, %v342
      %v344 = vpop.f32.mrb[0].mxu0
      %345 = vdwg.mxu0
      %v346 = vmax.f32 %v328, 0.0
      %v347 = vmax.f32 %v333, 0.0
      %v348 = vmax.f32 %v338, 0.0
      %v349 = vmax.f32 %v343, 0.0
      %v350 = vld [vmem:[%s3] sm:$0x1]
      %v352 = vlaneseq
      %v353 = vshrl.u32 %v352, 7
      %v354 = vsub.s32 0, %v353
      %v355 = vrot.slane %v350, %v354
      %v357 = vmul.f32 %v346, %v355
      %v358 = vmul.f32 %v347, %v355
      %v359 = vmul.f32 %v348, %v355
      %v360 = vmul.f32 %v349, %v355
      %vm361 = vcmask 523264
      %v362 = vsel %vm361, %v357, 0.0
      %363 = vadd.xlane.f32.xlu0 %v362
      %v364 = vpop.xlane.xlu0 %363
      %v365 = vsel %vm361, %v358, 0.0
      %366 = vadd.xlane.f32.xlu0 %v365
      %v367 = vpop.xlane.xlu0 %366
      %v368 = vsel %vm361, %v359, 0.0
      %369 = vadd.xlane.f32.xlu0 %v368
      %v370 = vpop.xlane.xlu0 %369
      %v371 = vsel %vm361, %v360, 0.0
      %372 = vadd.xlane.f32.xlu0 %v371
      %v373 = vpop.xlane.xlu0 %372
      %s374 = sld [smem:[#allocation2]]
      %v375 = vstv %s374
      %v376 = vadd.f32 %v364, %v375
      %v377 = vadd.f32 %v367, %v375
      %v378 = vadd.f32 %v370, %v375
      %v379 = vadd.f32 %v373, %v375
      %v380 = vxor.u32 %v376, 2147483648
      %v381 = vxor.u32 %v377, 2147483648
      %v382 = vxor.u32 %v378, 2147483648
      %v383 = vxor.u32 %v379, 2147483648
      %v384 = vmul.f32 %v380, 1.442695
      %v385 = vpow.pop %v384
      %v386 = vmul.f32 %v381, 1.442695
      %v387 = vpow.pop %v386
      %v388 = vmul.f32 %v382, 1.442695
      %v389 = vpow.pop %v388
      %v390 = vmul.f32 %v383, 1.442695
      %v391 = vpow.pop %v390
      %v392 = vadd.f32 %v385, 1.0
      %v393 = vadd.f32 %v387, 1.0
      %v394 = vadd.f32 %v389, 1.0
      %v395 = vadd.f32 %v391, 1.0
      %v396 = vrcp.pop %v392
      %v397 = vmul.f32 1.0, %v396
      %v398 = vrcp.pop %v393
      %v399 = vmul.f32 1.0, %v398
      %v400 = vrcp.pop %v394
      %v401 = vmul.f32 1.0, %v400
      %v402 = vrcp.pop %v395
      %v403 = vmul.f32 1.0, %v402
      %vm404 = vcmask 7168
      %405 = vst.msk [vmem:[%s227] sm:$0xff] %vm404, %v397
      %406 = vst.msk [vmem:[%s227 + $0x8] sm:$0xff] %vm404, %v399
      %407 = vst.msk [vmem:[%s227 + $0x10] sm:$0xff] %vm404, %v401
      %408 = vst.msk [vmem:[%s227 + $0x18] sm:$0xff] %vm404, %v403
      %s409 = smul.u32 4, %s17
      %p410 = scmp.lt.s32.totalorder %s409, 15
      %s411 = scalar_select %p410, %s409, 15
      %s412 = smul.addr %s411, 8
      %s413 = scalar_lea.vmem %s5, %s412
      // Predicated region
      $region41: #{tpu_custom_call.1} parent=39 // pred_check
        %p414 = pneg %p145
      $region42: #{tpu_custom_call.1} parent=39 // pred_check_branch
        %416 = sbr.rel (%p414) target = $region44
      $region43: #{tpu_custom_call.1} parent=39 // pred_region
        %s417 = smul.u32 4, %s17
      $region44: #{tpu_custom_call.1} parent=39 // pred_fallthru
        _
    $region40: #{tpu_custom_call.1} parent=5 // pred_fallthru
      _
    %p418 = scmp.le.s32.totalorder 2, %s12
    // Predicated region
    $region45: #{tpu_custom_call.1} parent=5 // pred_check
      %p419 = pneg %p418
    $region46: #{tpu_custom_call.1} parent=5 // pred_check_branch
      %421 = sbr.rel (%p419) target = $region48
    $region47: #{tpu_custom_call.1} parent=5 // pred_region
      %s422 = ssub.s32 %s12, 2
      // Predicated region
      $region49: #{tpu_custom_call.1} parent=47 // pred_check
        %p423 = pneg %p151
      $region50: #{tpu_custom_call.1} parent=47 // pred_check_branch
        %425 = sbr.rel (%p423) target = $region52
      $region51: #{tpu_custom_call.1} parent=47 // pred_region
        %s426 = smul.u32 4, %s18
        %p427 = scmp.lt.s32.totalorder %s426, 15
        %s428 = scalar_select %p427, %s426, 15
        %s429 = smul.addr %s428, 8
        %s430 = scalar_lea.vmem %s5, %s429
      $region52: #{tpu_custom_call.1} parent=47 // pred_fallthru
        _
    $region48: #{tpu_custom_call.1} parent=5 // pred_fallthru
      _
  $region6: #{tpu_custom_call.1} parent=0 // loop_footer
    %s16 = sadd.s32 1, %s12
  $region7: #{tpu_custom_call.1} parent=0 // loop_footer_branch
    %11 = sbr.rel target = $region3
  $region8: #{tpu_custom_call.1} parent=0 // loop_exit
    _

</llo_original>
